<compile_context>
chip_gen: v6e
topology: v6e:2x2x1
jax: 0.10.0
libtpu: 0.0.40
codegen_flags: <defaults>
</compile_context>

<pallas_src>
import functools

import jax
import jax.numpy as jnp
from jax.experimental import pallas as pl
from jax.experimental.pallas import tpu as pltpu

_LANES = 128
_SUBLANES = 8
# 4096 rows x 128 lanes x 4 B = 2 MiB per f32 tile (1 MiB for bf16).
_MAX_ROW_TILE = 4096


def _binarize_kernel(x_ref, bin_ref, part_ref, *, row_tile, valid_rows, need_mask):
    x = x_ref[...]

    # Binarize in the native dtype: +1 where x >= 0 (covers sign(0) -> +1), else -1.
    # TODO(synk): NaN inputs map to -1 here, whereas torch.sign would propagate NaN.
    bin_ref[...] = jnp.where(x >= 0, 1.0, -1.0).astype(bin_ref.dtype)

    # |x| partial sums, accumulated in float32 regardless of input dtype.
    x_abs = jnp.abs(x).astype(jnp.float32)
    if need_mask:
        # Ragged last tile: rows at/after `valid_rows` contain unspecified data.
        row_ids = (
            jax.lax.broadcasted_iota(jnp.int32, x_abs.shape, 0)
            + pl.program_id(0) * row_tile
        )
        x_abs = jnp.where(row_ids < valid_rows, x_abs, 0.0)

    # Reduce the (row_tile, 128) tile to one lane-dense (8, 128) vreg using only
    # element-wise (VALU) adds; the cheap final reduction over the tiny partials
    # array happens once, outside the kernel.
    part_ref[...] = jnp.sum(
        x_abs.reshape(row_tile // _SUBLANES, _SUBLANES, _LANES), axis=0
    )


def binarize_with_scale_factor(x: jax.Array):
    """Returns (binarized_input, scale_factor) like the PyTorch module.

    binarized_input has the same shape/dtype as x; scale_factor is a float32
    scalar = sum(|x|) / sum(x.shape).
    """
    orig_shape = x.shape
    orig_dtype = x.dtype
    denom = float(sum(orig_shape))
    total = x.size

    flat = jnp.ravel(x)  # row-major reshape: free, no dtype change

    # Rare tail pad (only if total is not a multiple of 8*128).  Padded zeros
    # add 0 to sum(|x|); padded binarized rows are sliced off afterwards.
    block_elems = _SUBLANES * _LANES
    padded_total = pl.cdiv(total, block_elems) * block_elems
    padded = padded_total != total
    if padded:
        flat = jnp.pad(flat, (0, padded_total - total))

    rows = padded_total // _LANES              # multiple of 8 by construction
    x2d = flat.reshape(rows, _LANES)

    row_tile = min(_MAX_ROW_TILE, rows)        # multiple of 8 either way
    num_tiles = pl.cdiv(rows, row_tile)
    need_mask = (rows % row_tile) != 0         # static trace-time decision

    kernel = functools.partial(
        _binarize_kernel, row_tile=row_tile, valid_rows=rows, need_mask=need_mask
    )

    bin2d, partials = pl.pallas_call(
        kernel,
        grid=(num_tiles,),
        in_specs=[pl.BlockSpec((row_tile, _LANES), lambda i: (i, 0))],
        out_specs=(
            pl.BlockSpec((row_tile, _LANES), lambda i: (i, 0)),
            pl.BlockSpec((_SUBLANES, _LANES), lambda i: (i, 0)),
        ),
        out_shape=(
            jax.ShapeDtypeStruct((rows, _LANES), orig_dtype),
            jax.ShapeDtypeStruct((num_tiles * _SUBLANES, _LANES), jnp.float32),
        ),
        compiler_params=pltpu.CompilerParams(
            dimension_semantics=("parallel",),   # disjoint outputs -> megacore OK
        ),
    )(x2d)

    if padded:
        binarized = bin2d.reshape(-1)[:total].reshape(orig_shape)
    else:
        binarized = bin2d.reshape(orig_shape)

    # Tiny wrapper-side reduction over num_tiles*8*128 f32 partials.
    scale_factor = jnp.sum(partials) / jnp.float32(denom)
    return binarized, scale_factor


def _reference(x):
    scale = jnp.sum(jnp.abs(x.astype(jnp.float32))) / float(sum(x.shape))
    sgn = jnp.sign(x)
    binarized = jnp.where(sgn == 0, jnp.ones_like(sgn), sgn)
    return binarized, scale


if __name__ == "__main__":
    key = jax.random.PRNGKey(0)
    # NCHW input, small shapes.
    x = jax.random.normal(key, (2, 4, 16, 16), dtype=jnp.float32)
    # Inject some exact zeros to exercise the sign(0) -> +1 branch.
    x = x.at[0, 0, 0, :4].set(0.0)

    binarized, scale_factor = binarize_with_scale_factor(x)
    jax.block_until_ready((binarized, scale_factor))

    ref_bin, ref_scale = _reference(x)
    assert binarized.shape == x.shape and binarized.dtype == x.dtype
    assert jnp.array_equal(binarized, ref_bin)
    assert jnp.allclose(scale_factor, ref_scale, rtol=1e-6, atol=1e-6)

    print("KERNEL_OK")
</pallas_src>

<mosaic_0001>
module attributes {stable_mosaic.version = 11 : i64} {
  func.func @_binarize_kernel(%arg0: i32, %arg1: memref<16x128xf32, #tpu.memory_space<vmem>>, %arg2: memref<16x128xf32, #tpu.memory_space<vmem>>, %arg3: memref<8x128xf32, #tpu.memory_space<vmem>>) attributes {dimension_semantics = [#tpu.dimension_semantics<parallel>], iteration_bounds = array<i64: 1>, scalar_prefetch = 0 : i64, scratch_operands = 0 : i64, tpu.core_type = #tpu.core_type<tc>, window_params = [{transform_indices = @transform_0, window_bounds = array<i64: 16, 128>}, {transform_indices = @transform_1, window_bounds = array<i64: 16, 128>}, {transform_indices = @transform_2, window_bounds = array<i64: 8, 128>}]} {
    %c0 = arith.constant 0 : index
    %c0_0 = arith.constant 0 : index
    %0 = vector.load %arg1[%c0, %c0_0] : memref<16x128xf32, #tpu.memory_space<vmem>>, vector<16x128xf32>
    %cst = arith.constant 0.000000e+00 : f32
    %1 = vector.broadcast %cst : f32 to vector<16x128xf32>
    %2 = arith.cmpf oge, %0, %1 : vector<16x128xf32>
    %cst_1 = arith.constant 1.000000e+00 : f32
    %cst_2 = arith.constant -1.000000e+00 : f32
    %3 = vector.broadcast %cst_1 : f32 to vector<16x128xf32>
    %4 = vector.broadcast %cst_2 : f32 to vector<16x128xf32>
    %5 = arith.select %2, %3, %4 : vector<16x128xi1>, vector<16x128xf32>
    %c0_3 = arith.constant 0 : index
    %c0_4 = arith.constant 0 : index
    %6 = vector.load %arg2[%c0_3, %c0_4] : memref<16x128xf32, #tpu.memory_space<vmem>>, vector<16x128xf32>
    tpu.vector_store %arg2[%c0_3, %c0_4], %5 {strides = array<i32>} : memref<16x128xf32, #tpu.memory_space<vmem>>, vector<16x128xf32>,
    %7 = math.absf %0 : vector<16x128xf32>
    %8 = vector.shape_cast %7 : vector<16x128xf32> to vector<2x8x128xf32>
    %cst_5 = arith.constant dense<0.000000e+00> : vector<8x128xf32>
    %9 = vector.multi_reduction <add>, %8, %cst_5 [0] : vector<2x8x128xf32> to vector<8x128xf32>
    %c0_6 = arith.constant 0 : index
    %c0_7 = arith.constant 0 : index
    %10 = vector.load %arg3[%c0_6, %c0_7] : memref<8x128xf32, #tpu.memory_space<vmem>>, vector<8x128xf32>
    tpu.vector_store %arg3[%c0_6, %c0_7], %9 {strides = array<i32>} : memref<8x128xf32, #tpu.memory_space<vmem>>, vector<8x128xf32>,
    return
  }
  func.func @transform_0(%arg0: i32) -> (i32, i32) {
    %c0_i32 = arith.constant 0 : i32
    %c0_i32_0 = arith.constant 0 : i32
    return %arg0, %c0_i32 : i32, i32
  }
  func.func @transform_1(%arg0: i32) -> (i32, i32) {
    %c0_i32 = arith.constant 0 : i32
    %c0_i32_0 = arith.constant 0 : i32
    return %arg0, %c0_i32 : i32, i32
  }
  func.func @transform_2(%arg0: i32) -> (i32, i32) {
    %c0_i32 = arith.constant 0 : i32
    %c0_i32_0 = arith.constant 0 : i32
    return %arg0, %c0_i32 : i32, i32
  }
}

</mosaic_0001>

<llo_original>
// kernel: tpu_custom_call.1
$region0: #{tpu_custom_call.1}
  #allocation0 [shape = 'u32[]', space=smem, size = 0x4, offset = 0x4, fixed_abs, tag = 'smem constant byte address 0x4 - core index']
  #allocation1 [shape = 'u32[144,128]{1,0:T(1,128)}', space=vmem, size = 0x12000, scoped, tag = 'internal scratch']
  %s0 = inlined_call_operand.hbm [shape: f32[16,128], index: 0, kind: input, shape index: {}]
  %s1 = inlined_call_operand.hbm [shape: f32[16,128], index: 1, kind: output, shape index: {0}]
  %s2 = inlined_call_operand.hbm [shape: f32[8,128], index: 2, kind: output, shape index: {1}]
  %3 = xla_tuple %s1, %s2
  %s4 = sld [smem:[#allocation0]]
  $region26: #{tpu_custom_call.1} parent=0
    _
  %s6 = ssub.s32 1, %s4
  %s7 = scalar_select 0, %s6, %s4
  $region1: #{tpu_custom_call.1} parent=0
    #allocation2 [shape = 'u8[8192]{0}', space=vmem, size = 0x2000, scoped, tag = 'input window, operand 0, single buffered']
    #allocation3 [shape = 's32[1]{0}', space=sflag, size = 0x4, scoped, tag = 'scoped memory for tpu_custom_call.1']
    #allocation4 [shape = 's32[1]{0}', space=sflag, size = 0x4, scoped, tag = 'scoped memory for tpu_custom_call.1']
    #allocation5 [shape = 'u8[8192]{0}', space=vmem, size = 0x2000, scoped, tag = 'output window, operand 0, single buffered']
    #allocation6 [shape = 'u8[4096]{0}', space=vmem, size = 0x1000, scoped, tag = 'output window, operand 1, single buffered']
    #allocation7 [shape = 's32[1]{0}', space=sflag, size = 0x4, scoped, tag = 'scoped memory for tpu_custom_call.1']
    %8 = vsyncpa [#allocation3], 0
    %9 = vsyncpa [#allocation4], 0
    %10 = vsyncpa [#allocation7], 0
    // Predicated region
    $region2: #{tpu_custom_call.1} parent=1 // pred_check
      _
    $region3: #{tpu_custom_call.1} parent=1 // pred_check_branch
      %12 = sbr.rel (0) target = $region5
    $region4: #{tpu_custom_call.1} parent=1 // pred_region
      %s14 = ssub.s32 256, 256
      %15 = vsyncadd [#allocation3], %s14
      %s16 = sshll.u32 [#allocation2], 4
      %s17 = int_to_ptr.vmem [resolvable:$true] %s16
      %22 = dma.hbm_to_vmem [thread:$0]  %s0, 256, %s17, [#allocation3], 128, 128, 8
    $region5: #{tpu_custom_call.1} parent=1 // pred_fallthru
      _
    // Predicated region
    $region6: #{tpu_custom_call.1} parent=1 // pred_check
      _
    $region7: #{tpu_custom_call.1} parent=1 // pred_check_branch
      %24 = sbr.rel (0) target = $region9
    $region8: #{tpu_custom_call.1} parent=1 // pred_region
      %25 = dma.done [#allocation3], 256
    $region9: #{tpu_custom_call.1} parent=1 // pred_fallthru
      _
    %v26 = vld [vmem:[#allocation2] sm:$0xff]
    %v27 = vld [vmem:[#allocation2 + $0x8] sm:$0xff]
    %vm28 = vcmp.ge.f32.partialorder %v26, 0.0
    %vm29 = vcmp.ge.f32.partialorder %v27, 0.0
    %v30 = vsel %vm28, 1.0, -1.0
    %v31 = vsel %vm29, 1.0, -1.0
    %32 = vst [vmem:[#allocation5] sm:$0xff] %v30
    %33 = vst [vmem:[#allocation5 + $0x8] sm:$0xff] %v31
    %v34 = vand.u32 2147483647, %v26
    %v35 = vand.u32 2147483647, %v27
    %v36 = vadd.f32 %v34, %v35
    %37 = vst [vmem:[#allocation6] sm:$0xff] %v36
    // Predicated region
    $region10: #{tpu_custom_call.1} parent=1 // pred_check
      _
    $region11: #{tpu_custom_call.1} parent=1 // pred_check_branch
      %39 = sbr.rel (0) target = $region13
    $region12: #{tpu_custom_call.1} parent=1 // pred_region
      %s41 = ssub.s32 256, 256
      %42 = vsyncadd [#allocation4], %s41
      %s43 = sshll.u32 [#allocation5], 4
      %s44 = int_to_ptr.vmem [resolvable:$true] %s43
      %49 = dma.vmem_to_hbm [thread:$0]  %s44, 256, %s1, [#allocation4], 128, 128, 8
    $region13: #{tpu_custom_call.1} parent=1 // pred_fallthru
      _
    // Predicated region
    $region14: #{tpu_custom_call.1} parent=1 // pred_check
      _
    $region15: #{tpu_custom_call.1} parent=1 // pred_check_branch
      %51 = sbr.rel (0) target = $region17
    $region16: #{tpu_custom_call.1} parent=1 // pred_region
      %s53 = ssub.s32 128, 128
      %54 = vsyncadd [#allocation7], %s53
      %s56 = sshll.u32 [#allocation6], 4
      %s57 = int_to_ptr.vmem [resolvable:$true] %s56
      %59 = dma.vmem_to_hbm [thread:$0]  %s57, 128, %s2, [#allocation7]
    $region17: #{tpu_custom_call.1} parent=1 // pred_fallthru
      _
    // Predicated region
    $region18: #{tpu_custom_call.1} parent=1 // pred_check
      _
    $region19: #{tpu_custom_call.1} parent=1 // pred_check_branch
      %61 = sbr.rel (0) target = $region21
    $region20: #{tpu_custom_call.1} parent=1 // pred_region
      %62 = dma.done [#allocation4], 256
    $region21: #{tpu_custom_call.1} parent=1 // pred_fallthru
      _
    // Predicated region
    $region22: #{tpu_custom_call.1} parent=1 // pred_check
      _
    $region23: #{tpu_custom_call.1} parent=1 // pred_check_branch
      %64 = sbr.rel (0) target = $region25
    $region24: #{tpu_custom_call.1} parent=1 // pred_region
      %65 = dma.done [#allocation7], 128
    $region25: #{tpu_custom_call.1} parent=1 // pred_fallthru
      _
    %66 = vsyncpa [#allocation3], 1
    %67 = vsyncpa [#allocation4], 1
    %68 = vsyncpa [#allocation7], 1

</llo_original>
